<compile_context>
chip_gen: v6e
topology: v6e:2x2x1
jax: 0.10.0
libtpu: 0.0.40
codegen_flags: <defaults>
</compile_context>

<pallas_src>
import functools
from typing import NamedTuple

import jax
import jax.numpy as jnp
from jax import lax
from jax.experimental import pallas as pl
from jax.experimental.pallas import tpu as pltpu

BN_EPS = 0.001
NEG_PAD = -1e9   # bias/beta for padded vocab columns: exp(.) underflows to exactly 0


# --------------------------------------------------------------------------------------
# small helpers
# --------------------------------------------------------------------------------------
def _approx_recip(x):
    # EUP vrcp + one Newton step: ~f32 accuracy, frees VPU slots vs exact divide.
    r = pl.reciprocal(x, approx=True)
    return r * (2.0 - x * r)


def _exp(x, dtype):
    if dtype == jnp.float32:
        return jnp.exp(x)
    # bf16 exp for v6e / v7x EUP (~2x throughput); accumulate back in f32.
    return jnp.exp(x.astype(dtype)).astype(jnp.float32)


def _vmem_capacity_bytes():
    try:
        return int(pltpu.get_tpu_info().vmem_capacity_bytes)
    except Exception:
        return 64 * 1024 * 1024   # conservative (v7x-sized) fallback


def _default_exp_dtype():
    # bf16 exp roughly doubles EUP throughput on v6e / v7x; v5e has no bf16 EUP.
    try:
        kind = jax.devices()[0].device_kind.lower()
    except Exception:
        return jnp.float32
    if ("v6" in kind) or ("v7" in kind) or ("7x" in kind):
        return jnp.bfloat16
    return jnp.float32


def _round_up(x, m):
    return ((x + m - 1) // m) * m


def _round_down_128(x):
    return max(128, (int(x) // 128) * 128)


def _select_tile_v(V, K, batch_hint, vmem_cap, target=16384):
    """Largest lane-dense vocab tile that keeps the double-buffered working set in VMEM."""
    budget = int(0.80 * vmem_cap)
    v128 = _round_up(max(V, 1), 128)
    fixed = 2 * 8 * v128 * 4 + (2 << 20)              # BN mean/rstd scratch + slack
    per_col = 4 * (2 * K + 2 * batch_hint + 2 * 8)    # W + out + bias/beta double-buffers
    tv_cap = max((budget - fixed) // per_col, 128)
    return min(target, v128, _round_down_128(tv_cap))


# --------------------------------------------------------------------------------------
# kernel
# --------------------------------------------------------------------------------------
def decoder_kernel(ann_ref, z_ref, w_ref, vec_ref, out_ref,
                   m_eta, l_eta, m_bn, l_bn, mean_sc, rstd_sc, *maybe_cache,
                   use_eta_cache, exp_dtype):
    p = pl.program_id(0)          # 0 = stats pass, 1 = normalize + write pass
    v = pl.program_id(1)          # vocab tile index
    a = ann_ref[0, 0]             # bn_annealing_factor
    tv = out_ref.shape[-1]
    off = pl.multiple_of(v * tv, tv)
    eta_cache = maybe_cache[0] if use_eta_cache else None

    bias = vec_ref[0:1, :]        # (1, tv) linear bias
    beta = vec_ref[1:2, :]        # (1, tv) BN beta (gamma is frozen to ones -> dropped)

    def fresh_eta():
        # (B, K) @ (K, tv) on the MXU; K is tiny so the kernel is HBM-bound on W.
        return jnp.dot(z_ref[...], w_ref[...],
                       preferred_element_type=jnp.float32) + bias

    @pl.when(jnp.logical_and(p == 0, v == 0))
    def _init():
        m_eta[...] = jnp.full(m_eta.shape, -jnp.inf, m_eta.dtype)
        l_eta[...] = jnp.zeros(l_eta.shape, l_eta.dtype)
        m_bn[...] = jnp.full(m_bn.shape, -jnp.inf, m_bn.dtype)
        l_bn[...] = jnp.zeros(l_bn.shape, l_bn.dtype)

    @pl.when(p == 0)
    def _stats_pass():
        eta = fresh_eta()
        if use_eta_cache:
            eta_cache[:, pl.ds(off, tv)] = eta.astype(eta_cache.dtype)

        # Online-softmax accumulators carried across vocab tiles in VMEM scratch.
        # Each branch is skipped entirely when its blend weight is zero.
        @pl.when(a > 0.0)
        def _():
            m_new = jnp.maximum(m_eta[...], jnp.max(eta, axis=-1, keepdims=True))
            l_eta[...] = (l_eta[...] * jnp.exp(m_eta[...] - m_new)
                          + jnp.sum(_exp(eta - m_new, exp_dtype), axis=-1, keepdims=True))
            m_eta[...] = m_new

        @pl.when(a < 1.0)
        def _():
            # BatchNorm1d training-mode stats; batch axis is NOT tiled, so per-column
            # stats are tile-local.  Single fused pass: var = E[x^2] - mean^2, clamped.
            inv_b = 1.0 / eta.shape[0]
            s1 = jnp.sum(eta, axis=0, keepdims=True)
            s2 = jnp.sum(eta * eta, axis=0, keepdims=True)
            mean = s1 * inv_b
            var = jnp.maximum(s2 * inv_b - mean * mean, 0.0)
            rstd = lax.rsqrt(var + BN_EPS)
            mean_sc[:, pl.ds(off, tv)] = mean      # cached for pass 1
            rstd_sc[:, pl.ds(off, tv)] = rstd
            x = (eta - mean) * rstd + beta
            m_new = jnp.maximum(m_bn[...], jnp.max(x, axis=-1, keepdims=True))
            l_bn[...] = (l_bn[...] * jnp.exp(m_bn[...] - m_new)
                         + jnp.sum(_exp(x - m_new, exp_dtype), axis=-1, keepdims=True))
            m_bn[...] = m_new

    @pl.when(p == 1)
    def _write_pass():
        if use_eta_cache:
            eta = eta_cache[:, pl.ds(off, tv)].astype(jnp.float32)
        else:
            eta = fresh_eta()

        def softmax_eta():
            return _exp(eta - m_eta[...], exp_dtype) * _approx_recip(l_eta[...])

        def softmax_bn():
            x = (eta - mean_sc[:, pl.ds(off, tv)]) * rstd_sc[:, pl.ds(off, tv)] + beta
            return _exp(x - m_bn[...], exp_dtype) * _approx_recip(l_bn[...])

        # Three exclusive cases -> exactly one lane-dense store per tile.
        @pl.when(a >= 1.0)
        def _():
            out_ref[...] = softmax_eta().astype(out_ref.dtype)

        @pl.when(a <= 0.0)
        def _():
            out_ref[...] = softmax_bn().astype(out_ref.dtype)

        @pl.when(jnp.logical_and(a > 0.0, a < 1.0))
        def _():
            out_ref[...] = (a * softmax_eta()
                            + (1.0 - a) * softmax_bn()).astype(out_ref.dtype)


# --------------------------------------------------------------------------------------
# parameter prep (one-time) + forward wrapper
# --------------------------------------------------------------------------------------
class DecoderParams(NamedTuple):
    w_kv: jax.Array     # (K, Vp) float32 -- pre-transposed weight, vocab padded to Vp
    vecs: jax.Array     # (2, Vp) float32 -- row 0: linear bias, row 1: BN beta
    vocab_size: int     # original (unpadded) vocab size V
    tile_v: int         # vocab tile (multiple of 128, divides Vp)


def prepare_decoder_params(weight, bias=None, bn_beta=None, *, tile_v=None, batch_hint=128):
    """One-time prep: transpose PyTorch (V, K) weight to (K, Vp), pad vocab to a tile
    multiple, and pack linear bias + BN beta into a single (2, Vp) array.  Padded
    columns get bias/beta = -1e9 so their softmax contribution is exactly zero.
    bn_gamma is frozen to ones in the module and therefore dropped entirely."""
    weight = jnp.asarray(weight, jnp.float32)
    V, K = weight.shape
    if bias is None:
        bias = jnp.zeros((V,), jnp.float32)
    if bn_beta is None:
        bn_beta = jnp.zeros((V,), jnp.float32)

    if tile_v is None:
        tv = _select_tile_v(V, K, batch_hint, _vmem_capacity_bytes())
    else:
        tv = _round_down_128(tile_v)
    Vp = pl.cdiv(V, tv) * tv
    pad = Vp - V

    w_kv = jnp.pad(weight.T, ((0, 0), (0, pad)))
    bias_p = jnp.pad(jnp.asarray(bias, jnp.float32).reshape(V), (0, pad),
                     constant_values=NEG_PAD)
    beta_p = jnp.pad(jnp.asarray(bn_beta, jnp.float32).reshape(V), (0, pad),
                     constant_values=NEG_PAD)
    vecs = jnp.stack([bias_p, beta_p], axis=0)
    return DecoderParams(w_kv=w_kv, vecs=vecs, vocab_size=V, tile_v=tv)


def decoder_forward(z, params, bn_annealing_factor=0.0, *,
                    exp_dtype=None, eta_cache=None, eta_cache_dtype=jnp.float32):
    """Decoder forward pass.  `params` comes from prepare_decoder_params (one-time).

    z: (B, K) float.  Returns (B, V) float32 reconstruction probabilities.
    eta_cache: None=auto (cache eta in VMEM if it fits), True/False to force.
    exp_dtype: None=auto (bf16 on v6e/v7x, f32 otherwise)."""
    z = jnp.asarray(z, jnp.float32)
    B, K = z.shape
    Kw, Vp = params.w_kv.shape
    if Kw != K:
        raise ValueError(f"num_topics mismatch: z has {K}, params have {Kw}")
    V, tv = params.vocab_size, params.tile_v
    nv = Vp // tv

    vmem_cap = _vmem_capacity_bytes()
    budget = int(0.80 * vmem_cap)
    step_bytes = 2 * (K * tv * 4) + 2 * (B * tv * 4) + 2 * (8 * tv * 4) + 2 * (B * K * 4)
    fixed_bytes = 2 * (8 * Vp * 4) + 4 * (max(B, 8) * 128 * 4) + (2 << 20)
    cache_bytes = B * Vp * jnp.dtype(eta_cache_dtype).itemsize
    if eta_cache is None:
        use_cache = (step_bytes + fixed_bytes + cache_bytes) <= budget
    else:
        use_cache = bool(eta_cache)

    if exp_dtype is None:
        exp_dtype = _default_exp_dtype()

    if use_cache:
        # Pass 1 reads eta from the VMEM cache -> pin the W stream to tile 0 so the
        # second full V*K HBM read of W disappears.
        w_index_map = lambda p, v: (0, v * (1 - p))
    else:
        w_index_map = lambda p, v: (0, v)

    scratch = [pltpu.VMEM((B, 1), jnp.float32)] * 4        # m/l for eta and eta_bn
    scratch += [pltpu.VMEM((1, Vp), jnp.float32)] * 2      # BN per-column mean / rstd
    if use_cache:
        scratch.append(pltpu.VMEM((B, Vp), eta_cache_dtype))

    ann = jnp.full((1, 1), bn_annealing_factor, jnp.float32)
    kernel = functools.partial(decoder_kernel, use_eta_cache=use_cache, exp_dtype=exp_dtype)

    out = pl.pallas_call(
        kernel,
        out_shape=jax.ShapeDtypeStruct((B, Vp), jnp.float32),
        grid=(2, nv),                                          # (pass, vocab tile)
        in_specs=[
            pl.BlockSpec(memory_space=pltpu.MemorySpace.SMEM),  # annealing scalar
            pl.BlockSpec((B, K), lambda p, v: (0, 0)),          # z (resident in VMEM)
            pl.BlockSpec((K, tv), w_index_map),                 # W tile, (K, V) layout
            pl.BlockSpec((2, tv), lambda p, v: (0, v)),         # packed bias + BN beta
        ],
        # Pinned to tile 0 during the stats pass (v*p == 0 there): no garbage
        # write-backs before pass 1 has filled each tile.
        out_specs=pl.BlockSpec((B, tv), lambda p, v: (0, v * p)),
        scratch_shapes=scratch,
        compiler_params=pltpu.CompilerParams(
            # Both axes carry state (online-softmax scratch; pass ordering), so they
            # must stay "arbitrary" — vocab cannot be megacore-parallel here.
            dimension_semantics=("arbitrary", "arbitrary"),
            vmem_limit_bytes=int(min(0.9 * vmem_cap, 128 * 1024 * 1024)),
        ),
    )(ann, z, params.w_kv, params.vecs)

    return out[:, :V]


# --------------------------------------------------------------------------------------
# reference + test
# --------------------------------------------------------------------------------------
def decoder_forward_ref(z, weight, bias, bn_beta, a):
    eta = z @ weight.T + bias
    mean = jnp.mean(eta, axis=0, keepdims=True)
    var = jnp.mean((eta - mean) ** 2, axis=0, keepdims=True)
    eta_bn = (eta - mean) / jnp.sqrt(var + BN_EPS) + bn_beta     # gamma == 1
    return a * jax.nn.softmax(eta, axis=-1) + (1 - a) * jax.nn.softmax(eta_bn, axis=-1)


if __name__ == "__main__":
    # Small deterministic setup: batch=8, num_topics=16, vocab_size=500.
    # vocab=500 is NOT a multiple of 128, so the padded-column path is exercised;
    # tile_v=128 -> 4 vocab tiles, so the cross-tile online softmax is exercised.
    B, NUM_TOPICS, VOCAB = 8, 16, 500
    key = jax.random.PRNGKey(0)
    kz, kw, kb = jax.random.split(key, 3)

    z = jax.random.normal(kz, (B, NUM_TOPICS), jnp.float32)

    # nn.Linear-style uniform init, bound = 1/sqrt(fan_in)
    bound = 1.0 / (NUM_TOPICS ** 0.5)
    weight = jax.random.uniform(kw, (VOCAB, NUM_TOPICS), jnp.float32, -bound, bound)
    bias = jax.random.uniform(kb, (VOCAB,), jnp.float32, -bound, bound)
    bn_beta = jnp.zeros((VOCAB,), jnp.float32)   # BatchNorm1d bias defaults to zeros

    # One-time parameter prep (transpose, pad, pack).
    params_small = prepare_decoder_params(weight, bias, bn_beta, tile_v=128)

    # Mid-anneal plus both extremes (exercises the pl.when-skipped branches).
    for a in (0.3, 0.0, 1.0):
        out = jax.block_until_ready(decoder_forward(z, params_small, a,
                                                    exp_dtype=jnp.float32))
        ref = decoder_forward_ref(z, weight, bias, bn_beta, a)
        assert out.shape == (B, VOCAB)
        assert jnp.allclose(out, ref, atol=2e-5, rtol=1e-3), f"mismatch vs reference at a={a}"
        assert jnp.allclose(jnp.sum(out, axis=-1), 1.0, atol=1e-4), f"rows not normalized at a={a}"

    # No-eta-cache code path (W streamed in both passes) must match exactly too.
    out = jax.block_until_ready(decoder_forward(z, params_small, 0.3,
                                                exp_dtype=jnp.float32, eta_cache=False))
    ref = decoder_forward_ref(z, weight, bias, bn_beta, 0.3)
    assert jnp.allclose(out, ref, atol=2e-5, rtol=1e-3), "mismatch (no eta cache)"

    # Auto tile + auto exp dtype (bf16 on v6e/v7x) — looser tolerance for bf16 exp.
    params_auto = prepare_decoder_params(weight, bias, bn_beta, batch_hint=B)
    out = jax.block_until_ready(decoder_forward(z, params_auto, 0.5))
    ref = decoder_forward_ref(z, weight, bias, bn_beta, 0.5)
    assert out.shape == (B, VOCAB)
    assert jnp.allclose(out, ref, atol=5e-3, rtol=2e-2), "mismatch (auto config)"
    assert jnp.allclose(jnp.sum(out, axis=-1), 1.0, atol=1e-2), "rows not normalized (auto config)"

    print("KERNEL_OK")
</pallas_src>

<mosaic_0001>
module attributes {stable_mosaic.version = 11 : i64} {
  func.func @decoder_kernel(%arg0: i32, %arg1: i32, %arg2: memref<1x1xf32, #tpu.memory_space<smem>>, %arg3: memref<8x16xf32, #tpu.memory_space<vmem>>, %arg4: memref<16x128xf32, #tpu.memory_space<vmem>>, %arg5: memref<2x128xf32, #tpu.memory_space<vmem>>, %arg6: memref<8x128xf32, #tpu.memory_space<vmem>>, %arg7: memref<8x1xf32, #tpu.memory_space<vmem>>, %arg8: memref<8x1xf32, #tpu.memory_space<vmem>>, %arg9: memref<8x1xf32, #tpu.memory_space<vmem>>, %arg10: memref<8x1xf32, #tpu.memory_space<vmem>>, %arg11: memref<1x512xf32, #tpu.memory_space<vmem>>, %arg12: memref<1x512xf32, #tpu.memory_space<vmem>>, %arg13: memref<8x512xf32, #tpu.memory_space<vmem>>) attributes {dimension_semantics = [#tpu.dimension_semantics<arbitrary>, #tpu.dimension_semantics<arbitrary>], iteration_bounds = array<i64: 2, 4>, scalar_prefetch = 0 : i64, scratch_operands = 7 : i64, tpu.core_type = #tpu.core_type<tc>, window_params = [{transform_indices = @transform_0, window_bounds = array<i64: 1, 1>}, {pipeline_mode = #tpu.pipeline_mode<synchronous>, transform_indices = @transform_1, window_bounds = array<i64: 8, 16>}, {transform_indices = @transform_2, window_bounds = array<i64: 16, 128>}, {transform_indices = @transform_3, window_bounds = array<i64: 2, 128>}, {transform_indices = @transform_4, window_bounds = array<i64: 8, 128>}]} {
    %c0 = arith.constant 0 : index
    %c0_0 = arith.constant 0 : index
    %0 = memref.load %arg2[%c0, %c0_0] : memref<1x1xf32, #tpu.memory_space<smem>>
    %c128_i32 = arith.constant 128 : i32
    %1 = arith.muli %arg1, %c128_i32 : i32
    %2 = tpu.assume_multiple %1, 128 : i32
    %c0_1 = arith.constant 0 : index
    %c0_2 = arith.constant 0 : index
    %3 = vector.load %arg5[%c0_1, %c0_2] : memref<2x128xf32, #tpu.memory_space<vmem>>, vector<1x128xf32>
    %c1 = arith.constant 1 : index
    %c0_3 = arith.constant 0 : index
    %4 = vector.load %arg5[%c1, %c0_3] : memref<2x128xf32, #tpu.memory_space<vmem>>, vector<1x128xf32>
    %c0_i32 = arith.constant 0 : i32
    %5 = arith.cmpi eq, %arg0, %c0_i32 : i32
    %c0_i32_4 = arith.constant 0 : i32
    %6 = arith.cmpi eq, %arg1, %c0_i32_4 : i32
    %7 = arith.andi %5, %6 : i1
    %8 = arith.extui %7 : i1 to i32
    %c0_i32_5 = arith.constant 0 : i32
    %9 = arith.cmpi ne, %8, %c0_i32_5 : i32
    scf.if %9 {
      %cst = arith.constant 0xFF800000 : f32
      %16 = vector.broadcast %cst : f32 to vector<8x1xf32>
      %c0_9 = arith.constant 0 : index
      %c0_10 = arith.constant 0 : index
      %17 = vector.load %arg7[%c0_9, %c0_10] : memref<8x1xf32, #tpu.memory_space<vmem>>, vector<8x1xf32>
      tpu.vector_store %arg7[%c0_9, %c0_10], %16 {strides = array<i32>} : memref<8x1xf32, #tpu.memory_space<vmem>>, vector<8x1xf32>,
      %cst_11 = arith.constant 0.000000e+00 : f32
      %18 = vector.broadcast %cst_11 : f32 to vector<8x1xf32>
      %c0_12 = arith.constant 0 : index
      %c0_13 = arith.constant 0 : index
      %19 = vector.load %arg8[%c0_12, %c0_13] : memref<8x1xf32, #tpu.memory_space<vmem>>, vector<8x1xf32>
      tpu.vector_store %arg8[%c0_12, %c0_13], %18 {strides = array<i32>} : memref<8x1xf32, #tpu.memory_space<vmem>>, vector<8x1xf32>,
      %cst_14 = arith.constant 0xFF800000 : f32
      %20 = vector.broadcast %cst_14 : f32 to vector<8x1xf32>
      %c0_15 = arith.constant 0 : index
      %c0_16 = arith.constant 0 : index
      %21 = vector.load %arg9[%c0_15, %c0_16] : memref<8x1xf32, #tpu.memory_space<vmem>>, vector<8x1xf32>
      tpu.vector_store %arg9[%c0_15, %c0_16], %20 {strides = array<i32>} : memref<8x1xf32, #tpu.memory_space<vmem>>, vector<8x1xf32>,
      %cst_17 = arith.constant 0.000000e+00 : f32
      %22 = vector.broadcast %cst_17 : f32 to vector<8x1xf32>
      %c0_18 = arith.constant 0 : index
      %c0_19 = arith.constant 0 : index
      %23 = vector.load %arg10[%c0_18, %c0_19] : memref<8x1xf32, #tpu.memory_space<vmem>>, vector<8x1xf32>
      tpu.vector_store %arg10[%c0_18, %c0_19], %22 {strides = array<i32>} : memref<8x1xf32, #tpu.memory_space<vmem>>, vector<8x1xf32>,
    } else {
    }
    %c0_i32_6 = arith.constant 0 : i32
    %10 = arith.cmpi eq, %arg0, %c0_i32_6 : i32
    %11 = arith.extui %10 : i1 to i32
    %c0_i32_7 = arith.constant 0 : i32
    %12 = arith.cmpi ne, %11, %c0_i32_7 : i32
    scf.if %12 {
      %c0_9 = arith.constant 0 : index
      %c0_10 = arith.constant 0 : index
      %16 = vector.load %arg3[%c0_9, %c0_10] : memref<8x16xf32, #tpu.memory_space<vmem>>, vector<8x16xf32>
      %c0_11 = arith.constant 0 : index
      %c0_12 = arith.constant 0 : index
      %17 = vector.load %arg4[%c0_11, %c0_12] : memref<16x128xf32, #tpu.memory_space<vmem>>, vector<16x128xf32>
      %cst = arith.constant dense<0.000000e+00> : vector<8x128xf32>
      %18 = tpu.matmul %16, %17, %cst {dimension_numbers = #tpu.dot_dimension_numbers<[1], [0], [0], [1], [0, 0, 1, 1], [], []>} : vector<8x16xf32>, vector<16x128xf32>, vector<8x128xf32> -> vector<8x128xf32>
      %19 = vector.broadcast %3 : vector<1x128xf32> to vector<8x128xf32>
      %20 = arith.addf %18, %19 : vector<8x128xf32>
      %c0_13 = arith.constant 0 : index
      %21 = arith.index_cast %2 : i32 to index
      %22 = vector.load %arg13[%c0_13, %21] : memref<8x512xf32, #tpu.memory_space<vmem>>, vector<8x128xf32>
      tpu.vector_store %arg13[%c0_13, %21], %20 {strides = array<i32>} : memref<8x512xf32, #tpu.memory_space<vmem>>, vector<8x128xf32>,
      %cst_14 = arith.constant 0.000000e+00 : f32
      %23 = arith.cmpf ogt, %0, %cst_14 : f32
      %24 = arith.extui %23 : i1 to i32
      %c0_i32_15 = arith.constant 0 : i32
      %25 = arith.cmpi ne, %24, %c0_i32_15 : i32
      scf.if %25 {
        %c0_18 = arith.constant 0 : index
        %c0_19 = arith.constant 0 : index
        %29 = vector.load %arg7[%c0_18, %c0_19] : memref<8x1xf32, #tpu.memory_space<vmem>>, vector<8x1xf32>
        %cst_20 = arith.constant dense<0xFF800000> : vector<8xf32>
        %30 = vector.multi_reduction <maximumf>, %20, %cst_20 [1] : vector<8x128xf32> to vector<8xf32>
        %31 = vector.shape_cast %30 : vector<8xf32> to vector<8x1xf32>
        %32 = arith.maximumf %29, %31 : vector<8x1xf32>
        %c0_21 = arith.constant 0 : index
        %c0_22 = arith.constant 0 : index
        %33 = vector.load %arg8[%c0_21, %c0_22] : memref<8x1xf32, #tpu.memory_space<vmem>>, vector<8x1xf32>
        %c0_23 = arith.constant 0 : index
        %c0_24 = arith.constant 0 : index
        %34 = vector.load %arg7[%c0_23, %c0_24] : memref<8x1xf32, #tpu.memory_space<vmem>>, vector<8x1xf32>
        %35 = arith.subf %34, %32 : vector<8x1xf32>
        %36 = math.exp %35 : vector<8x1xf32>
        %37 = arith.mulf %33, %36 : vector<8x1xf32>
        %38 = vector.broadcast %32 : vector<8x1xf32> to vector<8x128xf32>
        %39 = arith.subf %20, %38 : vector<8x128xf32>
        %40 = math.exp %39 : vector<8x128xf32>
        %cst_25 = arith.constant dense<0.000000e+00> : vector<8xf32>
        %41 = vector.multi_reduction <add>, %40, %cst_25 [1] : vector<8x128xf32> to vector<8xf32>
        %42 = vector.shape_cast %41 : vector<8xf32> to vector<8x1xf32>
        %43 = arith.addf %37, %42 : vector<8x1xf32>
        %c0_26 = arith.constant 0 : index
        %c0_27 = arith.constant 0 : index
        %44 = vector.load %arg8[%c0_26, %c0_27] : memref<8x1xf32, #tpu.memory_space<vmem>>, vector<8x1xf32>
        tpu.vector_store %arg8[%c0_26, %c0_27], %43 {strides = array<i32>} : memref<8x1xf32, #tpu.memory_space<vmem>>, vector<8x1xf32>,
        %c0_28 = arith.constant 0 : index
        %c0_29 = arith.constant 0 : index
        %45 = vector.load %arg7[%c0_28, %c0_29] : memref<8x1xf32, #tpu.memory_space<vmem>>, vector<8x1xf32>
        tpu.vector_store %arg7[%c0_28, %c0_29], %32 {strides = array<i32>} : memref<8x1xf32, #tpu.memory_space<vmem>>, vector<8x1xf32>,
      } else {
      }
      %cst_16 = arith.constant 1.000000e+00 : f32
      %26 = arith.cmpf olt, %0, %cst_16 : f32
      %27 = arith.extui %26 : i1 to i32
      %c0_i32_17 = arith.constant 0 : i32
      %28 = arith.cmpi ne, %27, %c0_i32_17 : i32
      scf.if %28 {
        %cst_18 = arith.constant dense<0.000000e+00> : vector<128xf32>
        %29 = vector.multi_reduction <add>, %20, %cst_18 [0] : vector<8x128xf32> to vector<128xf32>
        %30 = vector.shape_cast %29 : vector<128xf32> to vector<1x128xf32>
        %31 = arith.mulf %20, %20 : vector<8x128xf32>
        %cst_19 = arith.constant dense<0.000000e+00> : vector<128xf32>
        %32 = vector.multi_reduction <add>, %31, %cst_19 [0] : vector<8x128xf32> to vector<128xf32>
        %33 = vector.shape_cast %32 : vector<128xf32> to vector<1x128xf32>
        %cst_20 = arith.constant 1.250000e-01 : f32
        %34 = vector.broadcast %cst_20 : f32 to vector<1x128xf32>
        %35 = arith.mulf %30, %34 : vector<1x128xf32>
        %cst_21 = arith.constant 1.250000e-01 : f32
        %36 = vector.broadcast %cst_21 : f32 to vector<1x128xf32>
        %37 = arith.mulf %33, %36 : vector<1x128xf32>
        %38 = arith.mulf %35, %35 : vector<1x128xf32>
        %39 = arith.subf %37, %38 : vector<1x128xf32>
        %cst_22 = arith.constant 0.000000e+00 : f32
        %40 = vector.broadcast %cst_22 : f32 to vector<1x128xf32>
        %41 = arith.maximumf %39, %40 : vector<1x128xf32>
        %cst_23 = arith.constant 1.000000e-03 : f32
        %42 = vector.broadcast %cst_23 : f32 to vector<1x128xf32>
        %43 = arith.addf %41, %42 : vector<1x128xf32>
        %44 = math.rsqrt %43 : vector<1x128xf32>
        %c0_24 = arith.constant 0 : index
        %45 = arith.index_cast %2 : i32 to index
        %46 = vector.load %arg11[%c0_24, %45] : memref<1x512xf32, #tpu.memory_space<vmem>>, vector<1x128xf32>
        tpu.vector_store %arg11[%c0_24, %45], %35 {strides = array<i32>} : memref<1x512xf32, #tpu.memory_space<vmem>>, vector<1x128xf32>,
        %c0_25 = arith.constant 0 : index
        %47 = arith.index_cast %2 : i32 to index
        %48 = vector.load %arg12[%c0_25, %47] : memref<1x512xf32, #tpu.memory_space<vmem>>, vector<1x128xf32>
        tpu.vector_store %arg12[%c0_25, %47], %44 {strides = array<i32>} : memref<1x512xf32, #tpu.memory_space<vmem>>, vector<1x128xf32>,
        %49 = vector.broadcast %35 : vector<1x128xf32> to vector<8x128xf32>
        %50 = arith.subf %20, %49 : vector<8x128xf32>
        %51 = vector.broadcast %44 : vector<1x128xf32> to vector<8x128xf32>
        %52 = arith.mulf %50, %51 : vector<8x128xf32>
        %53 = vector.broadcast %4 : vector<1x128xf32> to vector<8x128xf32>
        %54 = arith.addf %52, %53 : vector<8x128xf32>
        %c0_26 = arith.constant 0 : index
        %c0_27 = arith.constant 0 : index
        %55 = vector.load %arg9[%c0_26, %c0_27] : memref<8x1xf32, #tpu.memory_space<vmem>>, vector<8x1xf32>
        %cst_28 = arith.constant dense<0xFF800000> : vector<8xf32>
        %56 = vector.multi_reduction <maximumf>, %54, %cst_28 [1] : vector<8x128xf32> to vector<8xf32>
        %57 = vector.shape_cast %56 : vector<8xf32> to vector<8x1xf32>
        %58 = arith.maximumf %55, %57 : vector<8x1xf32>
        %c0_29 = arith.constant 0 : index
        %c0_30 = arith.constant 0 : index
        %59 = vector.load %arg10[%c0_29, %c0_30] : memref<8x1xf32, #tpu.memory_space<vmem>>, vector<8x1xf32>
        %c0_31 = arith.constant 0 : index
        %c0_32 = arith.constant 0 : index
        %60 = vector.load %arg9[%c0_31, %c0_32] : memref<8x1xf32, #tpu.memory_space<vmem>>, vector<8x1xf32>
        %61 = arith.subf %60, %58 : vector<8x1xf32>
        %62 = math.exp %61 : vector<8x1xf32>
        %63 = arith.mulf %59, %62 : vector<8x1xf32>
        %64 = vector.broadcast %58 : vector<8x1xf32> to vector<8x128xf32>
        %65 = arith.subf %54, %64 : vector<8x128xf32>
        %66 = math.exp %65 : vector<8x128xf32>
        %cst_33 = arith.constant dense<0.000000e+00> : vector<8xf32>
        %67 = vector.multi_reduction <add>, %66, %cst_33 [1] : vector<8x128xf32> to vector<8xf32>
        %68 = vector.shape_cast %67 : vector<8xf32> to vector<8x1xf32>
        %69 = arith.addf %63, %68 : vector<8x1xf32>
        %c0_34 = arith.constant 0 : index
        %c0_35 = arith.constant 0 : index
        %70 = vector.load %arg10[%c0_34, %c0_35] : memref<8x1xf32, #tpu.memory_space<vmem>>, vector<8x1xf32>
        tpu.vector_store %arg10[%c0_34, %c0_35], %69 {strides = array<i32>} : memref<8x1xf32, #tpu.memory_space<vmem>>, vector<8x1xf32>,
        %c0_36 = arith.constant 0 : index
        %c0_37 = arith.constant 0 : index
        %71 = vector.load %arg9[%c0_36, %c0_37] : memref<8x1xf32, #tpu.memory_space<vmem>>, vector<8x1xf32>
        tpu.vector_store %arg9[%c0_36, %c0_37], %58 {strides = array<i32>} : memref<8x1xf32, #tpu.memory_space<vmem>>, vector<8x1xf32>,
      } else {
      }
    } else {
    }
    %c1_i32 = arith.constant 1 : i32
    %13 = arith.cmpi eq, %arg0, %c1_i32 : i32
    %14 = arith.extui %13 : i1 to i32
    %c0_i32_8 = arith.constant 0 : i32
    %15 = arith.cmpi ne, %14, %c0_i32_8 : i32
    scf.if %15 {
      %c0_9 = arith.constant 0 : index
      %16 = arith.index_cast %2 : i32 to index
      %17 = vector.load %arg13[%c0_9, %16] : memref<8x512xf32, #tpu.memory_space<vmem>>, vector<8x128xf32>
      %cst = arith.constant 1.000000e+00 : f32
      %18 = arith.cmpf oge, %0, %cst : f32
      %19 = arith.extui %18 : i1 to i32
      %c0_i32_10 = arith.constant 0 : i32
      %20 = arith.cmpi ne, %19, %c0_i32_10 : i32
      scf.if %20 {
        %c0_16 = arith.constant 0 : index
        %c0_17 = arith.constant 0 : index
        %29 = vector.load %arg7[%c0_16, %c0_17] : memref<8x1xf32, #tpu.memory_space<vmem>>, vector<8x1xf32>
        %30 = vector.broadcast %29 : vector<8x1xf32> to vector<8x128xf32>
        %31 = arith.subf %17, %30 : vector<8x128xf32>
        %32 = math.exp %31 : vector<8x128xf32>
        %c0_18 = arith.constant 0 : index
        %c0_19 = arith.constant 0 : index
        %33 = vector.load %arg8[%c0_18, %c0_19] : memref<8x1xf32, #tpu.memory_space<vmem>>, vector<8x1xf32>
        %34 = tpu.reciprocal %33 {approx = true} : vector<8x1xf32> -> vector<8x1xf32>
        %35 = arith.mulf %33, %34 : vector<8x1xf32>
        %cst_20 = arith.constant 2.000000e+00 : f32
        %36 = vector.broadcast %cst_20 : f32 to vector<8x1xf32>
        %37 = arith.subf %36, %35 : vector<8x1xf32>
        %38 = arith.mulf %34, %37 : vector<8x1xf32>
        %39 = vector.broadcast %38 : vector<8x1xf32> to vector<8x128xf32>
        %40 = arith.mulf %32, %39 : vector<8x128xf32>
        %c0_21 = arith.constant 0 : index
        %c0_22 = arith.constant 0 : index
        %41 = vector.load %arg6[%c0_21, %c0_22] : memref<8x128xf32, #tpu.memory_space<vmem>>, vector<8x128xf32>
        tpu.vector_store %arg6[%c0_21, %c0_22], %40 {strides = array<i32>} : memref<8x128xf32, #tpu.memory_space<vmem>>, vector<8x128xf32>,
      } else {
      }
      %cst_11 = arith.constant 0.000000e+00 : f32
      %21 = arith.cmpf ole, %0, %cst_11 : f32
      %22 = arith.extui %21 : i1 to i32
      %c0_i32_12 = arith.constant 0 : i32
      %23 = arith.cmpi ne, %22, %c0_i32_12 : i32
      scf.if %23 {
        %c0_16 = arith.constant 0 : index
        %29 = arith.index_cast %2 : i32 to index
        %30 = vector.load %arg11[%c0_16, %29] : memref<1x512xf32, #tpu.memory_space<vmem>>, vector<1x128xf32>
        %31 = vector.broadcast %30 : vector<1x128xf32> to vector<8x128xf32>
        %32 = arith.subf %17, %31 : vector<8x128xf32>
        %c0_17 = arith.constant 0 : index
        %33 = arith.index_cast %2 : i32 to index
        %34 = vector.load %arg12[%c0_17, %33] : memref<1x512xf32, #tpu.memory_space<vmem>>, vector<1x128xf32>
        %35 = vector.broadcast %34 : vector<1x128xf32> to vector<8x128xf32>
        %36 = arith.mulf %32, %35 : vector<8x128xf32>
        %37 = vector.broadcast %4 : vector<1x128xf32> to vector<8x128xf32>
        %38 = arith.addf %36, %37 : vector<8x128xf32>
        %c0_18 = arith.constant 0 : index
        %c0_19 = arith.constant 0 : index
        %39 = vector.load %arg9[%c0_18, %c0_19] : memref<8x1xf32, #tpu.memory_space<vmem>>, vector<8x1xf32>
        %40 = vector.broadcast %39 : vector<8x1xf32> to vector<8x128xf32>
        %41 = arith.subf %38, %40 : vector<8x128xf32>
        %42 = math.exp %41 : vector<8x128xf32>
        %c0_20 = arith.constant 0 : index
        %c0_21 = arith.constant 0 : index
        %43 = vector.load %arg10[%c0_20, %c0_21] : memref<8x1xf32, #tpu.memory_space<vmem>>, vector<8x1xf32>
        %44 = tpu.reciprocal %43 {approx = true} : vector<8x1xf32> -> vector<8x1xf32>
        %45 = arith.mulf %43, %44 : vector<8x1xf32>
        %cst_22 = arith.constant 2.000000e+00 : f32
        %46 = vector.broadcast %cst_22 : f32 to vector<8x1xf32>
        %47 = arith.subf %46, %45 : vector<8x1xf32>
        %48 = arith.mulf %44, %47 : vector<8x1xf32>
        %49 = vector.broadcast %48 : vector<8x1xf32> to vector<8x128xf32>
        %50 = arith.mulf %42, %49 : vector<8x128xf32>
        %c0_23 = arith.constant 0 : index
        %c0_24 = arith.constant 0 : index
        %51 = vector.load %arg6[%c0_23, %c0_24] : memref<8x128xf32, #tpu.memory_space<vmem>>, vector<8x128xf32>
        tpu.vector_store %arg6[%c0_23, %c0_24], %50 {strides = array<i32>} : memref<8x128xf32, #tpu.memory_space<vmem>>, vector<8x128xf32>,
      } else {
      }
      %cst_13 = arith.constant 0.000000e+00 : f32
      %24 = arith.cmpf ogt, %0, %cst_13 : f32
      %cst_14 = arith.constant 1.000000e+00 : f32
      %25 = arith.cmpf olt, %0, %cst_14 : f32
      %26 = arith.andi %24, %25 : i1
      %27 = arith.extui %26 : i1 to i32
      %c0_i32_15 = arith.constant 0 : i32
      %28 = arith.cmpi ne, %27, %c0_i32_15 : i32
      scf.if %28 {
        %c0_16 = arith.constant 0 : index
        %c0_17 = arith.constant 0 : index
        %29 = vector.load %arg7[%c0_16, %c0_17] : memref<8x1xf32, #tpu.memory_space<vmem>>, vector<8x1xf32>
        %30 = vector.broadcast %29 : vector<8x1xf32> to vector<8x128xf32>
        %31 = arith.subf %17, %30 : vector<8x128xf32>
        %32 = math.exp %31 : vector<8x128xf32>
        %c0_18 = arith.constant 0 : index
        %c0_19 = arith.constant 0 : index
        %33 = vector.load %arg8[%c0_18, %c0_19] : memref<8x1xf32, #tpu.memory_space<vmem>>, vector<8x1xf32>
        %34 = tpu.reciprocal %33 {approx = true} : vector<8x1xf32> -> vector<8x1xf32>
        %35 = arith.mulf %33, %34 : vector<8x1xf32>
        %cst_20 = arith.constant 2.000000e+00 : f32
        %36 = vector.broadcast %cst_20 : f32 to vector<8x1xf32>
        %37 = arith.subf %36, %35 : vector<8x1xf32>
        %38 = arith.mulf %34, %37 : vector<8x1xf32>
        %39 = vector.broadcast %38 : vector<8x1xf32> to vector<8x128xf32>
        %40 = arith.mulf %32, %39 : vector<8x128xf32>
        %41 = vector.broadcast %0 : f32 to vector<8x128xf32>
        %42 = arith.mulf %41, %40 : vector<8x128xf32>
        %cst_21 = arith.constant 1.000000e+00 : f32
        %43 = arith.subf %cst_21, %0 : f32
        %c0_22 = arith.constant 0 : index
        %44 = arith.index_cast %2 : i32 to index
        %45 = vector.load %arg11[%c0_22, %44] : memref<1x512xf32, #tpu.memory_space<vmem>>, vector<1x128xf32>
        %46 = vector.broadcast %45 : vector<1x128xf32> to vector<8x128xf32>
        %47 = arith.subf %17, %46 : vector<8x128xf32>
        %c0_23 = arith.constant 0 : index
        %48 = arith.index_cast %2 : i32 to index
        %49 = vector.load %arg12[%c0_23, %48] : memref<1x512xf32, #tpu.memory_space<vmem>>, vector<1x128xf32>
        %50 = vector.broadcast %49 : vector<1x128xf32> to vector<8x128xf32>
        %51 = arith.mulf %47, %50 : vector<8x128xf32>
        %52 = vector.broadcast %4 : vector<1x128xf32> to vector<8x128xf32>
        %53 = arith.addf %51, %52 : vector<8x128xf32>
        %c0_24 = arith.constant 0 : index
        %c0_25 = arith.constant 0 : index
        %54 = vector.load %arg9[%c0_24, %c0_25] : memref<8x1xf32, #tpu.memory_space<vmem>>, vector<8x1xf32>
        %55 = vector.broadcast %54 : vector<8x1xf32> to vector<8x128xf32>
        %56 = arith.subf %53, %55 : vector<8x128xf32>
        %57 = math.exp %56 : vector<8x128xf32>
        %c0_26 = arith.constant 0 : index
        %c0_27 = arith.constant 0 : index
        %58 = vector.load %arg10[%c0_26, %c0_27] : memref<8x1xf32, #tpu.memory_space<vmem>>, vector<8x1xf32>
        %59 = tpu.reciprocal %58 {approx = true} : vector<8x1xf32> -> vector<8x1xf32>
        %60 = arith.mulf %58, %59 : vector<8x1xf32>
        %cst_28 = arith.constant 2.000000e+00 : f32
        %61 = vector.broadcast %cst_28 : f32 to vector<8x1xf32>
        %62 = arith.subf %61, %60 : vector<8x1xf32>
        %63 = arith.mulf %59, %62 : vector<8x1xf32>
        %64 = vector.broadcast %63 : vector<8x1xf32> to vector<8x128xf32>
        %65 = arith.mulf %57, %64 : vector<8x128xf32>
        %66 = vector.broadcast %43 : f32 to vector<8x128xf32>
        %67 = arith.mulf %66, %65 : vector<8x128xf32>
        %68 = arith.addf %42, %67 : vector<8x128xf32>
        %c0_29 = arith.constant 0 : index
        %c0_30 = arith.constant 0 : index
        %69 = vector.load %arg6[%c0_29, %c0_30] : memref<8x128xf32, #tpu.memory_space<vmem>>, vector<8x128xf32>
        tpu.vector_store %arg6[%c0_29, %c0_30], %68 {strides = array<i32>} : memref<8x128xf32, #tpu.memory_space<vmem>>, vector<8x128xf32>,
      } else {
      }
    } else {
    }
    return
  }
  func.func @transform_0(%arg0: i32, %arg1: i32) -> (i32, i32) {
    %c0_i32 = arith.constant 0 : i32
    %c0_i32_0 = arith.constant 0 : i32
    %c0_i32_1 = arith.constant 0 : i32
    return %c0_i32, %c0_i32_0 : i32, i32
  }
  func.func @transform_1(%arg0: i32, %arg1: i32) -> (i32, i32) {
    %c0_i32 = arith.constant 0 : i32
    %c0_i32_0 = arith.constant 0 : i32
    %c0_i32_1 = arith.constant 0 : i32
    return %c0_i32, %c0_i32_0 : i32, i32
  }
  func.func @transform_2(%arg0: i32, %arg1: i32) -> (i32, i32) {
    %c1_i32 = arith.constant 1 : i32
    %0 = arith.subi %c1_i32, %arg0 : i32
    %1 = arith.muli %arg1, %0 : i32
    %c0_i32 = arith.constant 0 : i32
    %c0_i32_0 = arith.constant 0 : i32
    return %c0_i32, %1 : i32, i32
  }
  func.func @transform_3(%arg0: i32, %arg1: i32) -> (i32, i32) {
    %c0_i32 = arith.constant 0 : i32
    %c0_i32_0 = arith.constant 0 : i32
    return %c0_i32, %arg1 : i32, i32
  }
  func.func @transform_4(%arg0: i32, %arg1: i32) -> (i32, i32) {
    %0 = arith.muli %arg1, %arg0 : i32
    %c0_i32 = arith.constant 0 : i32
    %c0_i32_0 = arith.constant 0 : i32
    return %c0_i32, %0 : i32, i32
  }
}

</mosaic_0001>

<llo_original>
// kernel: tpu_custom_call.1
$region0: #{tpu_custom_call.1}
  #allocation0 [shape = 'u32[]', space=smem, size = 0x4, offset = 0x4, fixed_abs, tag = 'smem constant byte address 0x4 - core index']
  #allocation1 [shape = 'u32[144,128]{1,0:T(1,128)}', space=vmem, size = 0x12000, scoped, tag = 'internal scratch']
  #allocation2 [shape = 'f32[8,1]{1,0:T(8,128)}', space=vmem, size = 0x1000, scoped, tag = 'scratch operand']
  #allocation3 [shape = 'f32[8,1]{1,0:T(8,128)}', space=vmem, size = 0x1000, scoped, tag = 'scratch operand']
  #allocation4 [shape = 'f32[8,1]{1,0:T(8,128)}', space=vmem, size = 0x1000, scoped, tag = 'scratch operand']
  #allocation5 [shape = 'f32[8,1]{1,0:T(8,128)}', space=vmem, size = 0x1000, scoped, tag = 'scratch operand']
  #allocation6 [shape = 'f32[1,512]{1,0:T(1,128)}', space=vmem, size = 0x800, scoped, tag = 'scratch operand']
  #allocation7 [shape = 'f32[1,512]{1,0:T(1,128)}', space=vmem, size = 0x800, scoped, tag = 'scratch operand']
  #allocation8 [shape = 'f32[8,512]{1,0:T(8,128)}', space=vmem, size = 0x4000, scoped, tag = 'scratch operand']
  #allocation9 [shape = 'f32[1,1]{1,0:T(1,128)S(6)}', space=smem, size = 0x200, scoped, tag = 'scoped memory for tpu_custom_call.1']
  %s0 = inlined_call_operand.<no memory space> [shape: f32[1,1], index: 0, kind: input, shape index: {}]
  %s1 = inlined_call_operand.hbm [shape: f32[8,16], index: 1, kind: input, shape index: {}]
  %s2 = inlined_call_operand.hbm [shape: f32[16,512], index: 2, kind: input, shape index: {}]
  %s3 = inlined_call_operand.hbm [shape: f32[2,512], index: 3, kind: input, shape index: {}]
  %s4 = inlined_call_operand.hbm [shape: f32[8,512], index: 4, kind: output, shape index: {}]
  %s5 = sld [smem:[#allocation0]]
  $region93: #{tpu_custom_call.1} parent=0
    _
  %s7 = ssub.s32 1, %s5
  %s8 = scalar_select 0, %s7, %s5
  %9 = sst [smem:[#allocation9]] %s0
  $region1: #{tpu_custom_call.1} parent=0
    #allocation10 [shape = 'u8[4096]{0}', space=vmem, size = 0x1000, scoped, tag = 'input window, operand 1, single buffered']
    #allocation11 [shape = 's32[2]{0}', space=sflag, size = 0x8, scoped, tag = 'scoped memory for tpu_custom_call.1']
    #allocation12 [shape = 's32[2]{0}', space=sflag, size = 0x8, scoped, tag = 'scoped memory for tpu_custom_call.1']
    #allocation13 [shape = 'u8[16384]{0}', space=vmem, size = 0x4000, scoped, tag = 'input window, operand 2']
    #allocation14 [shape = 's32[2]{0}', space=sflag, size = 0x8, scoped, tag = 'scoped memory for tpu_custom_call.1']
    #allocation15 [shape = 'u8[2048]{0}', space=vmem, size = 0x800, scoped, tag = 'input window, operand 3']
    #allocation16 [shape = 'u8[8192]{0}', space=vmem, size = 0x2000, scoped, tag = 'output window, operand 0']
    %10 = vsyncpa [#allocation11], 0
    %11 = vsyncpa [#allocation14], 0
    %s12 = scalar_lea.sflag [#allocation14], 1
    %13 = vsyncpa %s12, 0
    %14 = vsyncpa [#allocation12], 0
    %s15 = scalar_lea.sflag [#allocation12], 1
    %16 = vsyncpa %s15, 0
    loop: start=0, step=1, limit=10
    $region2: #{tpu_custom_call.1} parent=1 // loop_pre_header
      _
    $region3: #{tpu_custom_call.1} parent=1 // loop_header
      %s18 = sphi 0, %s22
      %p19 = scmp.ge.s32.totalorder %s18, 10
      %s25 = sphi 0, %s37
      %s26 = sphi 0, %s33
      %s27 = sphi 0, %s25
      %s28 = sphi 0, %s26
      %s29 = sphi 0, %s27
      %s30 = sphi 0, %s28
      %s38 = sphi 0, %s38
      %s40 = sphi 0, %s38
      %s41 = sphi 0, %s40
      %s55 = sphi 0, %s41
      %s59 = sphi 0, %s59
      %s61 = sphi 0, %s59
      %s62 = sphi 0, %s61
      %s76 = sphi 0, %s62
      %s86 = sphi 0, %s88
      %s89 = sphi 0, %s86
      %s90 = sphi 0, %s89
      %s106 = sphi 0, %s90
      %s112 = sphi 0, %s114
      %s115 = sphi 0, %s112
      %s116 = sphi 0, %s115
      %s132 = sphi 0, %s116
      %s140 = sphi 0, %s142
      %s143 = sphi 0, %s140
      %s144 = sphi 0, %s143
      %s160 = sphi 0, %s144
    $region4: #{tpu_custom_call.1} parent=1 // loop_header_branch
      %21 = sbr.rel (%p19) target = $region8
    $region5: #{tpu_custom_call.1} parent=1 // loop_body
      %s23 = ssub.s32 %s18, 1
      %s24 = ssub.s32 %s18, 2
      %s31 = sadd.s32 1, %s26
      %p32 = scmp.ge.s32.totalorder %s31, 4
      %s33 = scalar_select %p32, 0, %s31
      %s34 = sadd.s32 1, %s25
      %s35 = scalar_select %p32, %s34, %s25
      %p36 = scmp.ge.s32.totalorder %s35, 2
      %s37 = scalar_select %p36, 0, %s35
      %s39 = sadd.s32 %s38, 1
      %p42 = scmp.eq.s32.totalorder %s18, 7
      %p43 = scmp.ne.s32.totalorder %s38, %s40
      %p44 = scmp.eq.s32.totalorder %s18, 0
      %p45 = por %p43, %p44
      %p46 = scmp.ne.s32.totalorder %s38, %s40
      %p47 = scmp.eq.s32.totalorder %s23, 7
      %p48 = por %p46, %p47
      %p49 = scmp.ne.s32.totalorder %s40, %s41
      %p50 = scmp.eq.s32.totalorder %s23, 0
      %p51 = por %p49, %p50
      %p52 = scmp.ne.s32.totalorder %s40, %s41
      %p53 = scmp.eq.s32.totalorder %s24, 7
      %p54 = por %p52, %p53
      %p56 = scmp.ne.s32.totalorder %s41, %s55
      %p57 = scmp.eq.s32.totalorder %s24, 0
      %p58 = por %p56, %p57
      %s60 = sadd.s32 %s59, 1
      %p63 = scmp.eq.s32.totalorder %s18, 7
      %p64 = scmp.ne.s32.totalorder %s59, %s61
      %p65 = scmp.eq.s32.totalorder %s18, 0
      %p66 = por %p64, %p65
      %p67 = scmp.ne.s32.totalorder %s59, %s61
      %p68 = scmp.eq.s32.totalorder %s23, 7
      %p69 = por %p67, %p68
      %p70 = scmp.ne.s32.totalorder %s61, %s62
      %p71 = scmp.eq.s32.totalorder %s23, 0
      %p72 = por %p70, %p71
      %p73 = scmp.ne.s32.totalorder %s61, %s62
      %p74 = scmp.eq.s32.totalorder %s24, 7
      %p75 = por %p73, %p74
      %p77 = scmp.ne.s32.totalorder %s62, %s76
      %p78 = scmp.eq.s32.totalorder %s24, 0
      %p79 = por %p77, %p78
      %s80 = ssub.s32 1, %s25
      %s81 = smul.u32 %s26, %s80
      %s82 = ssub.s32 1, %s37
      %s83 = smul.u32 %s33, %s82
      %s84 = ssub.s32 %s81, %s83
      %p85 = scmp.eq.s32.totalorder %s84, 0
      %s87 = sadd.s32 %s86, 1
      %s88 = scalar_select %p85, %s86, %s87
      %p91 = pneg %p85
      %p92 = scmp.eq.s32.totalorder %s18, 7
      %p93 = por %p91, %p92
      %p94 = scmp.ne.s32.totalorder %s86, %s89
      %p95 = scmp.eq.s32.totalorder %s18, 0
      %p96 = por %p94, %p95
      %p97 = scmp.ne.s32.totalorder %s86, %s89
      %p98 = scmp.eq.s32.totalorder %s23, 7
      %p99 = por %p97, %p98
      %p100 = scmp.ne.s32.totalorder %s89, %s90
      %p101 = scmp.eq.s32.totalorder %s23, 0
      %p102 = por %p100, %p101
      %p103 = scmp.ne.s32.totalorder %s89, %s90
      %p104 = scmp.eq.s32.totalorder %s24, 7
      %p105 = por %p103, %p104
      %p107 = scmp.ne.s32.totalorder %s90, %s106
      %p108 = scmp.eq.s32.totalorder %s24, 0
      %p109 = por %p107, %p108
      %s110 = ssub.s32 %s26, %s33
      %p111 = scmp.eq.s32.totalorder %s110, 0
      %s113 = sadd.s32 %s112, 1
      %s114 = scalar_select %p111, %s112, %s113
      %p117 = pneg %p111
      %p118 = scmp.eq.s32.totalorder %s18, 7
      %p119 = por %p117, %p118
      %p120 = scmp.ne.s32.totalorder %s112, %s115
      %p121 = scmp.eq.s32.totalorder %s18, 0
      %p122 = por %p120, %p121
      %p123 = scmp.ne.s32.totalorder %s112, %s115
      %p124 = scmp.eq.s32.totalorder %s23, 7
      %p125 = por %p123, %p124
      %p126 = scmp.ne.s32.totalorder %s115, %s116
      %p127 = scmp.eq.s32.totalorder %s23, 0
      %p128 = por %p126, %p127
      %p129 = scmp.ne.s32.totalorder %s115, %s116
      %p130 = scmp.eq.s32.totalorder %s24, 7
      %p131 = por %p129, %p130
      %p133 = scmp.ne.s32.totalorder %s116, %s132
      %p134 = scmp.eq.s32.totalorder %s24, 0
      %p135 = por %p133, %p134
      %s136 = smul.u32 %s26, %s25
      %s137 = smul.u32 %s33, %s37
      %s138 = ssub.s32 %s136, %s137
      %p139 = scmp.eq.s32.totalorder %s138, 0
      %s141 = sadd.s32 %s140, 1
      %s142 = scalar_select %p139, %s140, %s141
      %p145 = pneg %p139
      %p146 = scmp.eq.s32.totalorder %s18, 7
      %p147 = por %p145, %p146
      %p148 = scmp.ne.s32.totalorder %s140, %s143
      %p149 = scmp.eq.s32.totalorder %s18, 0
      %p150 = por %p148, %p149
      %p151 = scmp.ne.s32.totalorder %s140, %s143
      %p152 = scmp.eq.s32.totalorder %s23, 7
      %p153 = por %p151, %p152
      %p154 = scmp.ne.s32.totalorder %s143, %s144
      %p155 = scmp.eq.s32.totalorder %s23, 0
      %p156 = por %p154, %p155
      %p157 = scmp.ne.s32.totalorder %s143, %s144
      %p158 = scmp.eq.s32.totalorder %s24, 7
      %p159 = por %p157, %p158
      %p161 = scmp.ne.s32.totalorder %s144, %s160
      %p162 = scmp.eq.s32.totalorder %s24, 0
      %p163 = por %p161, %p162
      %p164 = scmp.le.s32.totalorder 1, %s18
      %p165 = scmp.lt.s32.totalorder %s18, 9
      %p166 = pnand %p164, %p165
      %p167 = pneg %p166
      // Predicated region
      $region9: #{tpu_custom_call.1} parent=5 // pred_check
        _
      $region10: #{tpu_custom_call.1} parent=5 // pred_check_branch
        %169 = sbr.rel (%p166) target = $region12
      $region11: #{tpu_custom_call.1} parent=5 // pred_region
        %s170 = ssub.s32 %s18, 1
        // Predicated region
        $region13: #{tpu_custom_call.1} parent=11 // pred_check
          %p171 = pneg %p51
        $region14: #{tpu_custom_call.1} parent=11 // pred_check_branch
          %173 = sbr.rel (%p171) target = $region16
        $region15: #{tpu_custom_call.1} parent=11 // pred_region
          _
        $region16: #{tpu_custom_call.1} parent=11 // pred_fallthru
          _
        // Predicated region
        $region17: #{tpu_custom_call.1} parent=11 // pred_check
          %p174 = pneg %p72
        $region18: #{tpu_custom_call.1} parent=11 // pred_check_branch
          %176 = sbr.rel (%p174) target = $region20
        $region19: #{tpu_custom_call.1} parent=11 // pred_region
          %s178 = ssub.s32 128, 128
          %179 = vsyncadd [#allocation11], %s178
          %s181 = sshll.u32 [#allocation10], 4
          %s182 = int_to_ptr.vmem [resolvable:$true] %s181
          %184 = dma.hbm_to_vmem [thread:$0]  %s1, 128, %s182, [#allocation11]
        $region20: #{tpu_custom_call.1} parent=11 // pred_fallthru
          _
      $region12: #{tpu_custom_call.1} parent=5 // pred_fallthru
        _
      %p185 = scmp.lt.s32.totalorder %s18, 8
      // Predicated region
      $region21: #{tpu_custom_call.1} parent=5 // pred_check
        %p186 = pneg %p185
      $region22: #{tpu_custom_call.1} parent=5 // pred_check_branch
        %188 = sbr.rel (%p186) target = $region24
      $region23: #{tpu_custom_call.1} parent=5 // pred_region
        // Predicated region
        $region25: #{tpu_custom_call.1} parent=23 // pred_check
          %p189 = pneg %p96
        $region26: #{tpu_custom_call.1} parent=23 // pred_check_branch
          %191 = sbr.rel (%p189) target = $region28
        $region27: #{tpu_custom_call.1} parent=23 // pred_region
          %s192 = sand.u32 %s18, 1
          %s193 = scalar_lea.sflag [#allocation14], %s192
          %s194 = sand.u32 %s86, 1
          %s195 = smul.addr %s194, 16
          %s196 = scalar_lea.vmem [#allocation13], %s195
          %s197 = ssub.s32 1, %s25
          %s198 = smul.u32 %s26, %s197
          %s200 = ssub.s32 256, 256
          %201 = vsyncadd %s193, %s200
          %s202 = smul.addr %s198, 128
          %s203 = scalar_lea.hbm %s2, %s202
          %s204 = sshll.u32 %s196, 4
          %s205 = int_to_ptr.vmem [resolvable:$true] %s204
          %210 = dma.hbm_to_vmem [thread:$0]  %s203, 256, %s205, %s193, 512, 128, 8
        $region28: #{tpu_custom_call.1} parent=23 // pred_fallthru
          _
        // Predicated region
        $region29: #{tpu_custom_call.1} parent=23 // pred_check
          %p211 = pneg %p122
        $region30: #{tpu_custom_call.1} parent=23 // pred_check_branch
          %213 = sbr.rel (%p211) target = $region32
        $region31: #{tpu_custom_call.1} parent=23 // pred_region
          %s214 = sand.u32 %s18, 1
          %s215 = scalar_lea.sflag [#allocation14], %s214
          %s216 = sand.u32 %s112, 1
          %s217 = smul.addr %s216, 2
          %s218 = scalar_lea.vmem [#allocation15], %s217
          %s220 = ssub.s32 32, 32
          %221 = vsyncadd %s215, %s220
          %s222 = smul.addr %s26, 32
          %s223 = scalar_lea.hbm %s3, %s222
          %s225 = sshll.u32 %s218, 4
          %s226 = int_to_ptr.vmem [resolvable:$true] %s225
          %228 = dma.hbm_to_vmem [thread:$0]  %s223, 32, %s226, %s215
        $region32: #{tpu_custom_call.1} parent=23 // pred_fallthru
          _
      $region24: #{tpu_custom_call.1} parent=5 // pred_fallthru
        _
      %p229 = scmp.le.s32.totalorder 1, %s18
      %p230 = scmp.lt.s32.totalorder %s18, 9
      %p231 = pnand %p229, %p230
      %p232 = pneg %p231
      // Predicated region
      $region33: #{tpu_custom_call.1} parent=5 // pred_check
        _
      $region34: #{tpu_custom_call.1} parent=5 // pred_check_branch
        %234 = sbr.rel (%p231) target = $region36
      $region35: #{tpu_custom_call.1} parent=5 // pred_region
        %s235 = ssub.s32 %s18, 1
        // Predicated region
        $region37: #{tpu_custom_call.1} parent=35 // pred_check
          %p236 = pneg %p72
        $region38: #{tpu_custom_call.1} parent=35 // pred_check_branch
          %238 = sbr.rel (%p236) target = $region40
        $region39: #{tpu_custom_call.1} parent=35 // pred_region
          %239 = dma.done [#allocation11], 128
        $region40: #{tpu_custom_call.1} parent=35 // pred_fallthru
          _
        %s240 = sand.u32 %s23, 1
        %s241 = scalar_lea.sflag [#allocation14], %s240
        %s242 = sand.u32 %s89, 1
        %s243 = smul.addr %s242, 16
        %s244 = scalar_lea.vmem [#allocation13], %s243
        // Predicated region
        $region41: #{tpu_custom_call.1} parent=35 // pred_check
          %p245 = pneg %p102
        $region42: #{tpu_custom_call.1} parent=35 // pred_check_branch
          %247 = sbr.rel (%p245) target = $region44
        $region43: #{tpu_custom_call.1} parent=35 // pred_region
          %248 = dma.done %s241, 256
        $region44: #{tpu_custom_call.1} parent=35 // pred_fallthru
          _
        %s249 = sand.u32 %s23, 1
        %s250 = scalar_lea.sflag [#allocation14], %s249
        %s251 = sand.u32 %s115, 1
        %s252 = smul.addr %s251, 2
        %s253 = scalar_lea.vmem [#allocation15], %s252
        // Predicated region
        $region45: #{tpu_custom_call.1} parent=35 // pred_check
          %p254 = pneg %p128
        $region46: #{tpu_custom_call.1} parent=35 // pred_check_branch
          %256 = sbr.rel (%p254) target = $region48
        $region47: #{tpu_custom_call.1} parent=35 // pred_region
          %257 = dma.done %s250, 32
        $region48: #{tpu_custom_call.1} parent=35 // pred_fallthru
          _
        %p258 = pneg %p51
        %p259 = pneg %p48
        %p260 = pneg %p72
        %p261 = pneg %p69
        %s262 = sand.u32 %s23, 1
        %s263 = scalar_lea.sflag [#allocation14], %s262
        %s264 = sand.u32 %s89, 1
        %s265 = smul.addr %s264, 16
        %s266 = scalar_lea.vmem [#allocation13], %s265
        %p267 = pneg %p102
        %p268 = pneg %p99
        %s269 = sand.u32 %s23, 1
        %s270 = scalar_lea.sflag [#allocation14], %s269
        %s271 = sand.u32 %s115, 1
        %s272 = smul.addr %s271, 2
        %s273 = scalar_lea.vmem [#allocation15], %s272
        %p274 = pneg %p128
        %p275 = pneg %p125
        %p276 = pneg %p156
        %p277 = pneg %p153
        %s278 = sand.u32 %s143, 1
        %s279 = scalar_lea.sflag [#allocation12], %s278
        %s280 = sand.u32 %s143, 1
        %s281 = smul.addr %s280, 8
        %s282 = scalar_lea.vmem [#allocation16], %s281
        %s283 = ssub.s32 1, %s27
        %s284 = smul.u32 %s28, %s283
        %s285 = smul.u32 %s28, %s27
        %s286 = sld [smem:[#allocation9]]
        %s287 = smul.u32 %s28, 128
        %v288 = vld [vmem:[%s253] sm:$0x1]
        %v289 = vld [vmem:[%s253 + $0x1] sm:$0x1]
        %p290 = scmp.eq.s32.totalorder %s27, 0
        %p291 = scmp.eq.s32.totalorder %s28, 0
        %p292 = pnand %p290, %p291
        %p293 = pneg %p292
        // Predicated region
        $region49: #{tpu_custom_call.1} parent=35 // pred_check
          _
        $region50: #{tpu_custom_call.1} parent=35 // pred_check_branch
          %295 = sbr.rel (%p292) target = $region52
        $region51: #{tpu_custom_call.1} parent=35 // pred_region
          %vm296 = vcmask 7168
          %297 = vst.msk [vmem:[#allocation2] sm:$0xff] %vm296, -inf
          %298 = vst.msk [vmem:[#allocation3] sm:$0xff] %vm296, 0.0
          %299 = vst.msk [vmem:[#allocation4] sm:$0xff] %vm296, -inf
          %300 = vst.msk [vmem:[#allocation5] sm:$0xff] %vm296, 0.0
        $region52: #{tpu_custom_call.1} parent=35 // pred_fallthru
          _
        // Predicated region
        $region53: #{tpu_custom_call.1} parent=35 // pred_check
          %p301 = pneg %p290
        $region54: #{tpu_custom_call.1} parent=35 // pred_check_branch
          %303 = sbr.rel (%p301) target = $region56
        $region55: #{tpu_custom_call.1} parent=35 // pred_region
          %v304 = vld [vmem:[#allocation10] sm:$0xff]
          %v305 = vld [vmem:[%s244] sm:$0xff]
          %v306 = vld [vmem:[%s244 + $0x8] sm:$0xff]
          %v307 = vlaneseq
          %v308 = vshrl.u32 %v307, 7
          %v309 = vsub.s32 0, %v308
          %v310 = vrot.slane %v288, %v309
          %vm311 = vcmask 130048
          %v313 = vsel %vm311, %v304, 0
          %315 = vmatprep.subr.mxu0 0.0
          %316 = vmatpush1.msra.mxu0 0.0
          %317 = vmatprep.subr.mxu0 0.0
          %318 = vmatpush1.msra.mxu0 0.0
          %319 = vmatprep.subr.mxu0 0.0
          %320 = vmatpush1.msra.mxu0 0.0
          %321 = vmatprep.subr.mxu0 0.0
          %322 = vmatpush1.msra.mxu0 0.0
          %323 = vmatprep.subr.mxu0 0.0
          %324 = vmatpush1.msra.mxu0 0.0
          %325 = vmatprep.subr.mxu0 0.0
          %326 = vmatpush1.msra.mxu0 0.0
          %327 = vmatprep.subr.mxu0 0.0
          %328 = vmatpush1.msra.mxu0 0.0
          %329 = vmatprep.subr.mxu0 0.0
          %330 = vmatpush1.msra.mxu0 0.0
          %331 = vmatprep.subr.mxu0 0.0
          %332 = vmatpush1.msra.mxu0 0.0
          %333 = vmatprep.subr.mxu0 0.0
          %334 = vmatpush1.msra.mxu0 0.0
          %335 = vmatprep.subr.mxu0 0.0
          %336 = vmatpush1.msra.mxu0 0.0
          %337 = vmatprep.subr.mxu0 0.0
          %338 = vmatpush1.msra.mxu0 0.0
          %339 = vmatprep.subr.mxu0 0.0
          %340 = vmatpush1.msra.mxu0 0.0
          %341 = vmatprep.subr.mxu0 0.0
          %342 = vmatpush1.msra.mxu0 0.0
          %343 = vmatprep.subr.mxu0 0.0
          %344 = vmatpush1.msra.mxu0 %v306
          %345 = vmatprep.subr.mxu0 0.0
          %346 = vmatpush1.msra.mxu0 %v305
          %347 = vmatprep.subr.mxu0 0.0
          %348 = vmatpush2.msra.mxu0 0.0
          %349 = vmatprep.subr.mxu0 0.0
          %350 = vmatpush2.msra.mxu0 0.0
          %351 = vmatprep.subr.mxu0 0.0
          %352 = vmatpush2.msra.mxu0 0.0
          %353 = vmatprep.subr.mxu0 0.0
          %354 = vmatpush2.msra.mxu0 0.0
          %355 = vmatprep.subr.mxu0 0.0
          %356 = vmatpush2.msra.mxu0 0.0
          %357 = vmatprep.subr.mxu0 0.0
          %358 = vmatpush2.msra.mxu0 0.0
          %359 = vmatprep.subr.mxu0 0.0
          %360 = vmatpush2.msra.mxu0 0.0
          %361 = vmatprep.subr.mxu0 0.0
          %362 = vmatpush2.msra.mxu0 0.0
          %363 = vmatprep.subr.mxu0 0.0
          %364 = vmatpush2.msra.mxu0 0.0
          %365 = vmatprep.subr.mxu0 0.0
          %366 = vmatpush2.msra.mxu0 0.0
          %367 = vmatprep.subr.mxu0 0.0
          %368 = vmatpush2.msra.mxu0 0.0
          %369 = vmatprep.subr.mxu0 0.0
          %370 = vmatpush2.msra.mxu0 0.0
          %371 = vmatprep.subr.mxu0 0.0
          %372 = vmatpush2.msra.mxu0 0.0
          %373 = vmatprep.subr.mxu0 0.0
          %374 = vmatpush2.msra.mxu0 0.0
          %375 = vmatprep.subr.mxu0 0.0
          %376 = vmatpush2.msra.mxu0 0.0
          %377 = vmatprep.subr.mxu0 0.0
          %378 = vmatpush2.msra.mxu0 0.0
          %379 = vmatprep.mubr.f32.mxu0 0.0
          %380 = vmatmul.mubr.f32.gmra.mxu0 %v313
          %v381 = vpop.f32.mrf.mxu0
          %v382 = vadd.f32 %v310, %v381
          %v383 = vpop.f32.mrf.mxu0
          %384 = vdwg.mxu0
          %s385 = sshra.s32 %s287, 7
          %s386 = sand.u32 %s287, 127
          %s387 = smul.addr %s385, 8
          %s388 = scalar_lea.vmem [#allocation8], %s387
          %389 = vst [vmem:[%s388] sm:$0xff] %v382
          %p390 = scmp.gt.f32.partialorder %s286, 0.0
          // Predicated region
          $region57: #{tpu_custom_call.1} parent=55 // pred_check
            %p391 = pneg %p390
          $region58: #{tpu_custom_call.1} parent=55 // pred_check_branch
            %393 = sbr.rel (%p391) target = $region60
          $region59: #{tpu_custom_call.1} parent=55 // pred_region
            %v394 = vld [vmem:[#allocation2] sm:$0xff]
            %395 = vmax.xlane.f32.xlu0 %v382
            %v396 = vpop.xlane.xlu0 %395
            %v397 = vmax.f32 %v394, %v396
            %v398 = vld [vmem:[#allocation3] sm:$0xff]
            %v399 = vsub.f32 %v394, %v397
            %v400 = vmul.f32 %v399, 1.442695
            %v401 = vpow.pop %v400
            %v402 = vmul.f32 %v398, %v401
            %404 = vset.pattern.permute.xlu0 0
            %405 = vperm.xlu0 %404, %v397
            %v406 = vpop.permute.xlu0 %405
            %v408 = vsub.f32 %v382, %v406
            %v409 = vmul.f32 %v408, 1.442695
            %v410 = vpow.pop %v409
            %411 = vadd.xlane.f32.xlu0 %v410
            %v412 = vpop.xlane.xlu0 %411
            %v413 = vadd.f32 %v402, %v412
            %vm414 = vcmask 7168
            %415 = vst.msk [vmem:[#allocation3] sm:$0xff] %vm414, %v413
            %416 = vst.msk [vmem:[#allocation2] sm:$0xff] %vm414, %v397
          $region60: #{tpu_custom_call.1} parent=55 // pred_fallthru
            _
          %p417 = scmp.lt.f32.partialorder %s286, 1.0
          // Predicated region
          $region61: #{tpu_custom_call.1} parent=55 // pred_check
            %p418 = pneg %p417
          $region62: #{tpu_custom_call.1} parent=55 // pred_check_branch
            %420 = sbr.rel (%p418) target = $region64
          $region63: #{tpu_custom_call.1} parent=55 // pred_region
            %v421 = vrot.slane %v382, 4
            %v422 = vadd.f32 %v382, %v421
            %v423 = vrot.slane %v422, 2
            %v424 = vadd.f32 %v422, %v423
            %v425 = vrot.slane %v424, 1
            %v426 = vadd.f32 %v424, %v425
            %v427 = vmul.f32 %v382, %v382
            %v428 = vrot.slane %v427, 4
            %v429 = vadd.f32 %v427, %v428
            %v430 = vrot.slane %v429, 2
            %v431 = vadd.f32 %v429, %v430
            %v432 = vrot.slane %v431, 1
            %v433 = vadd.f32 %v431, %v432
            %v434 = vmul.f32 %v426, 0.125
            %v435 = vmul.f32 %v433, 0.125
            %v436 = vmul.f32 %v434, %v434
            %v437 = vsub.f32 %v435, %v436
            %v438 = vmax.f32 %v437, 0.0
            %v439 = vadd.f32 %v438, 0.001
            %v440 = vrsqrt.pop %v439
            %s441 = scalar_lea.vmem [#allocation6], %s385
            %v442 = vlaneseq
            %vm443 = vcmp.ge.s32.totalorder %v442, 0
            %vm444 = vcmp.lt.s32.totalorder %v442, 128
            %vm445 = vmand %vm443, %vm444
            %446 = vst.msk [vmem:[%s441] sm:$0x1] %vm445, %v434
            %s447 = scalar_lea.vmem [#allocation7], %s385
            %448 = vst.msk [vmem:[%s447] sm:$0x1] %vm445, %v440
            %v449 = vsub.f32 %v382, %v434
            %v450 = vmul.f32 %v449, %v440
            %v451 = vlaneseq
            %v452 = vshrl.u32 %v451, 7
            %v453 = vsub.s32 0, %v452
            %v454 = vrot.slane %v289, %v453
            %v455 = vadd.f32 %v450, %v454
            %v456 = vld [vmem:[#allocation4] sm:$0xff]
            %457 = vmax.xlane.f32.xlu0 %v455
            %v458 = vpop.xlane.xlu0 %457
            %v459 = vmax.f32 %v456, %v458
            %v460 = vld [vmem:[#allocation5] sm:$0xff]
            %v461 = vsub.f32 %v456, %v459
            %v462 = vmul.f32 %v461, 1.442695
            %v463 = vpow.pop %v462
            %v464 = vmul.f32 %v460, %v463
            %466 = vset.pattern.permute.xlu0 0
            %467 = vperm.xlu0 %466, %v459
            %v468 = vpop.permute.xlu0 %467
            %v470 = vsub.f32 %v455, %v468
            %v471 = vmul.f32 %v470, 1.442695
            %v472 = vpow.pop %v471
            %473 = vadd.xlane.f32.xlu0 %v472
            %v474 = vpop.xlane.xlu0 %473
            %v475 = vadd.f32 %v464, %v474
            %vm476 = vcmask 7168
            %477 = vst.msk [vmem:[#allocation5] sm:$0xff] %vm476, %v475
            %478 = vst.msk [vmem:[#allocation4] sm:$0xff] %vm476, %v459
          $region64: #{tpu_custom_call.1} parent=55 // pred_fallthru
            _
        $region56: #{tpu_custom_call.1} parent=35 // pred_fallthru
          _
        %p479 = scmp.eq.s32.totalorder %s27, 1
        // Predicated region
        $region65: #{tpu_custom_call.1} parent=35 // pred_check
          %p480 = pneg %p479
        $region66: #{tpu_custom_call.1} parent=35 // pred_check_branch
          %482 = sbr.rel (%p480) target = $region68
        $region67: #{tpu_custom_call.1} parent=35 // pred_region
          %s483 = sshra.s32 %s287, 7
          %s484 = sand.u32 %s287, 127
          %s485 = smul.addr %s483, 8
          %s486 = scalar_lea.vmem [#allocation8], %s485
          %v487 = vld [vmem:[%s486] sm:$0xff]
          %p488 = scmp.ge.f32.partialorder %s286, 1.0
          // Predicated region
          $region69: #{tpu_custom_call.1} parent=67 // pred_check
            %p489 = pneg %p488
          $region70: #{tpu_custom_call.1} parent=67 // pred_check_branch
            %491 = sbr.rel (%p489) target = $region72
          $region71: #{tpu_custom_call.1} parent=67 // pred_region
            %v492 = vld [vmem:[#allocation2] sm:$0xff]
            %494 = vset.pattern.permute.xlu0 0
            %495 = vperm.xlu0 %494, %v492
            %v496 = vpop.permute.xlu0 %495
            %v498 = vsub.f32 %v487, %v496
            %v499 = vmul.f32 %v498, 1.442695
            %v500 = vpow.pop %v499
            %v501 = vld [vmem:[#allocation3] sm:$0xff]
            %v502 = vrcp.pop %v501
            %v503 = vmul.f32 %v501, %v502
            %v504 = vsub.f32 2.0, %v503
            %v505 = vmul.f32 %v502, %v504
            %507 = vset.pattern.permute.xlu0 0
            %508 = vperm.xlu0 %507, %v505
            %v509 = vpop.permute.xlu0 %508
            %v511 = vmul.f32 %v500, %v509
            %512 = vst [vmem:[%s282] sm:$0xff] %v511
          $region72: #{tpu_custom_call.1} parent=67 // pred_fallthru
            _
          %p513 = scmp.le.f32.partialorder %s286, 0.0
          // Predicated region
          $region73: #{tpu_custom_call.1} parent=67 // pred_check
            %p514 = pneg %p513
          $region74: #{tpu_custom_call.1} parent=67 // pred_check_branch
            %516 = sbr.rel (%p514) target = $region76
          $region75: #{tpu_custom_call.1} parent=67 // pred_region
            %s517 = scalar_lea.vmem [#allocation6], %s483
            %v518 = vld [vmem:[%s517] sm:$0x1]
            %v520 = vlaneseq
            %v521 = vshrl.u32 %v520, 7
            %v522 = vsub.s32 0, %v521
            %v523 = vrot.slane %v518, %v522
            %v525 = vsub.f32 %v487, %v523
            %s526 = scalar_lea.vmem [#allocation7], %s483
            %v527 = vld [vmem:[%s526] sm:$0x1]
            %v529 = vlaneseq
            %v530 = vshrl.u32 %v529, 7
            %v531 = vsub.s32 0, %v530
            %v532 = vrot.slane %v527, %v531
            %v534 = vmul.f32 %v525, %v532
            %v535 = vlaneseq
            %v536 = vshrl.u32 %v535, 7
            %v537 = vsub.s32 0, %v536
            %v538 = vrot.slane %v289, %v537
            %v539 = vadd.f32 %v534, %v538
            %v540 = vld [vmem:[#allocation4] sm:$0xff]
            %542 = vset.pattern.permute.xlu0 0
            %543 = vperm.xlu0 %542, %v540
            %v544 = vpop.permute.xlu0 %543
            %v546 = vsub.f32 %v539, %v544
            %v547 = vmul.f32 %v546, 1.442695
            %v548 = vpow.pop %v547
            %v549 = vld [vmem:[#allocation5] sm:$0xff]
            %v550 = vrcp.pop %v549
            %v551 = vmul.f32 %v549, %v550
            %v552 = vsub.f32 2.0, %v551
            %v553 = vmul.f32 %v550, %v552
            %555 = vset.pattern.permute.xlu0 0
            %556 = vperm.xlu0 %555, %v553
            %v557 = vpop.permute.xlu0 %556
            %v559 = vmul.f32 %v548, %v557
            %560 = vst [vmem:[%s282] sm:$0xff] %v559
          $region76: #{tpu_custom_call.1} parent=67 // pred_fallthru
            _
          %p561 = scmp.gt.f32.partialorder %s286, 0.0
          %p562 = scmp.lt.f32.partialorder %s286, 1.0
          %p563 = pnand %p561, %p562
          %p564 = pneg %p563
          // Predicated region
          $region77: #{tpu_custom_call.1} parent=67 // pred_check
            _
          $region78: #{tpu_custom_call.1} parent=67 // pred_check_branch
            %566 = sbr.rel (%p563) target = $region80
          $region79: #{tpu_custom_call.1} parent=67 // pred_region
            %v567 = vld [vmem:[#allocation2] sm:$0xff]
            %569 = vset.pattern.permute.xlu0 0
            %570 = vperm.xlu0 %569, %v567
            %v571 = vpop.permute.xlu0 %570
            %v573 = vsub.f32 %v487, %v571
            %v574 = vmul.f32 %v573, 1.442695
            %v575 = vpow.pop %v574
            %v576 = vld [vmem:[#allocation3] sm:$0xff]
            %v577 = vrcp.pop %v576
            %v578 = vmul.f32 %v576, %v577
            %v579 = vsub.f32 2.0, %v578
            %v580 = vmul.f32 %v577, %v579
            %582 = vset.pattern.permute.xlu0 0
            %583 = vperm.xlu0 %582, %v580
            %v584 = vpop.permute.xlu0 %583
            %v586 = vmul.f32 %v575, %v584
            %v587 = vstv %s286
            %v588 = vmul.f32 %v587, %v586
            %s589 = ssub.f32 1.0, %s286
            %s590 = scalar_lea.vmem [#allocation6], %s483
            %v591 = vld [vmem:[%s590] sm:$0x1]
            %v593 = vlaneseq
            %v594 = vshrl.u32 %v593, 7
            %v595 = vsub.s32 0, %v594
            %v596 = vrot.slane %v591, %v595
            %v598 = vsub.f32 %v487, %v596
            %s599 = scalar_lea.vmem [#allocation7], %s483
            %v600 = vld [vmem:[%s599] sm:$0x1]
            %v602 = vlaneseq
            %v603 = vshrl.u32 %v602, 7
            %v604 = vsub.s32 0, %v603
            %v605 = vrot.slane %v600, %v604
            %v607 = vmul.f32 %v598, %v605
            %v608 = vlaneseq
            %v609 = vshrl.u32 %v608, 7
            %v610 = vsub.s32 0, %v609
            %v611 = vrot.slane %v289, %v610
            %v612 = vadd.f32 %v607, %v611
            %v613 = vld [vmem:[#allocation4] sm:$0xff]
            %615 = vset.pattern.permute.xlu0 0
            %616 = vperm.xlu0 %615, %v613
            %v617 = vpop.permute.xlu0 %616
            %v619 = vsub.f32 %v612, %v617
            %v620 = vmul.f32 %v619, 1.442695
            %v621 = vpow.pop %v620
            %v622 = vld [vmem:[#allocation5] sm:$0xff]
            %v623 = vrcp.pop %v622
            %v624 = vmul.f32 %v622, %v623
            %v625 = vsub.f32 2.0, %v624
            %v626 = vmul.f32 %v623, %v625
            %628 = vset.pattern.permute.xlu0 0
            %629 = vperm.xlu0 %628, %v626
            %v630 = vpop.permute.xlu0 %629
            %v632 = vmul.f32 %v621, %v630
            %v633 = vstv %s589
            %v634 = vmul.f32 %v633, %v632
            %v635 = vadd.f32 %v588, %v634
            %636 = vst [vmem:[%s282] sm:$0xff] %v635
          $region80: #{tpu_custom_call.1} parent=67 // pred_fallthru
            _
        $region68: #{tpu_custom_call.1} parent=35 // pred_fallthru
          _
        %s637 = sand.u32 %s143, 1
        %s638 = scalar_lea.sflag [#allocation12], %s637
        %s639 = sand.u32 %s143, 1
        %s640 = smul.addr %s639, 8
        %s641 = scalar_lea.vmem [#allocation16], %s640
        // Predicated region
        $region81: #{tpu_custom_call.1} parent=35 // pred_check
          %p642 = pneg %p153
        $region82: #{tpu_custom_call.1} parent=35 // pred_check_branch
          %644 = sbr.rel (%p642) target = $region84
        $region83: #{tpu_custom_call.1} parent=35 // pred_region
          %s645 = smul.u32 %s28, %s27
          %s647 = ssub.s32 128, 128
          %648 = vsyncadd %s638, %s647
          %s649 = smul.addr %s645, 128
          %s650 = scalar_lea.hbm %s4, %s649
          %s652 = sshll.u32 %s641, 4
          %s653 = int_to_ptr.vmem [resolvable:$true] %s652
          %655 = dma.vmem_to_hbm [thread:$0]  %s653, 128, %s650, %s638
        $region84: #{tpu_custom_call.1} parent=35 // pred_fallthru
          _
      $region36: #{tpu_custom_call.1} parent=5 // pred_fallthru
        _
      %p656 = scmp.le.s32.totalorder 2, %s18
      // Predicated region
      $region85: #{tpu_custom_call.1} parent=5 // pred_check
        %p657 = pneg %p656
      $region86: #{tpu_custom_call.1} parent=5 // pred_check_branch
        %659 = sbr.rel (%p657) target = $region88
      $region87: #{tpu_custom_call.1} parent=5 // pred_region
        %s660 = ssub.s32 %s18, 2
        // Predicated region
        $region89: #{tpu_custom_call.1} parent=87 // pred_check
          %p661 = pneg %p159
        $region90: #{tpu_custom_call.1} parent=87 // pred_check_branch
          %663 = sbr.rel (%p661) target = $region92
        $region91: #{tpu_custom_call.1} parent=87 // pred_region
          %s664 = sand.u32 %s144, 1
          %s665 = scalar_lea.sflag [#allocation12], %s664
          %s666 = sand.u32 %s144, 1
          %s667 = smul.addr %s666, 8
          %s668 = scalar_lea.vmem [#allocation16], %s667
          %669 = dma.done %s665, 128
        $region92: #{tpu_custom_call.1} parent=87 // pred_fallthru
          _
      $region88: #{tpu_custom_call.1} parent=5 // pred_fallthru
        _
    $region6: #{tpu_custom_call.1} parent=1 // loop_footer
      %s22 = sadd.s32 1, %s18
    $region7: #{tpu_custom_call.1} parent=1 // loop_footer_branch
      %17 = sbr.rel target = $region3
    $region8: #{tpu_custom_call.1} parent=1 // loop_exit
      _
    %670 = vsyncpa [#allocation11], 1
    %s671 = scalar_lea.sflag [#allocation11], 1
    %672 = vsyncpa %s671, 1
    %673 = vsyncpa [#allocation14], 1
    %s674 = scalar_lea.sflag [#allocation14], 1
    %675 = vsyncpa %s674, 1
    %676 = vsyncpa [#allocation12], 1
    %s677 = scalar_lea.sflag [#allocation12], 1
    %678 = vsyncpa %s677, 1

</llo_original>
